<compile_context>
chip_gen: v7x
topology: tpu7x:2x2x1
jax: 0.10.0
libtpu: 0.0.40
codegen_flags: <defaults>
</compile_context>

<pallas_src>
import numpy as np
import jax
import jax.numpy as jnp
from jax import lax
from jax.experimental import pallas as pl
from jax.experimental.pallas import tpu as pltpu

H = W = 4
C1_IN, C1_OUT = 1, 8
C2_IN, C2_OUT = 8, 16
FC1_IN, FC1_OUT = 16 * 4 * 4, 16
FC2_IN, FC2_OUT = 16, 1

LANE = 128                     # lane-dense padding for the fc1 output
X_DIM = C1_IN * H * W          # 16
H1_DIM = C1_OUT * H * W        # 128
H2_DIM = C2_OUT * H * W        # 256

SUB_ROWS = 512                 # in-kernel batch sub-tile (bounds live ranges)


def _round_up(n, m):
    return ((n + m - 1) // m) * m


def _default_tb_max():
    """Larger batch tiles on 128 MiB-VMEM parts (v5e/v6e); conservative on
    v7x (64 MiB, 2 TCs -> keep grid >= 2 with tb <= 4096)."""
    try:
        info = pltpu.get_tpu_info()
        if getattr(info, "vmem_capacity_bytes", 0) >= 96 * 1024 * 1024:
            return 8192
    except Exception:
        pass
    return 4096


def _choose_tiling(B, tb_max):
    """Even split of B into >= 2 tiles (pipelining + megacore sharding),
    rounded to the in-kernel sub-tile (or the 16-row bf16 sublane pack), so
    padding waste is bounded instead of up to a whole 4096-row tile."""
    n_tiles = max(2, -(-B // tb_max))
    tb = -(-B // n_tiles)
    if tb > SUB_ROWS:
        tb = _round_up(tb, SUB_ROWS)
    else:
        tb = _round_up(tb, 16)
    n_tiles = -(-B // tb)
    return tb, n_tiles


# ---------------------------------------------------------------------------
# Parameter setup (host-side, one-time)
# ---------------------------------------------------------------------------
def conv3x3_as_matrix(w):
    """Expand a 3x3 / stride 1 / pad 1 conv weight (Cout, Cin, 3, 3) into a
    dense matrix M of shape (Cin*H*W, Cout*H*W) acting on NCHW-flattened
    vectors:  out_flat = in_flat @ M."""
    cout, cin, _, _ = w.shape
    M = np.zeros((cin * H * W, cout * H * W), dtype=np.float32)
    for co in range(cout):
        for ci in range(cin):
            for oh in range(H):
                for ow in range(W):
                    for kh in range(3):
                        for kw in range(3):
                            ih = oh + kh - 1
                            iw = ow + kw - 1
                            if 0 <= ih < H and 0 <= iw < W:
                                M[ci * H * W + ih * W + iw,
                                  co * H * W + oh * W + ow] = w[co, ci, kh, kw]
    return M


def init_params(key):
    """Deterministic synthetic init (PyTorch-like uniform fan-in bounds)."""
    ks = jax.random.split(key, 8)

    def u(k, shape, fan_in):
        bound = 1.0 / np.sqrt(fan_in)
        return jax.random.uniform(k, shape, jnp.float32, -bound, bound)

    w_conv1 = u(ks[0], (C1_OUT, C1_IN, 3, 3), C1_IN * 9)
    b_conv1 = u(ks[1], (C1_OUT,), C1_IN * 9)
    w_conv2 = u(ks[2], (C2_OUT, C2_IN, 3, 3), C2_IN * 9)
    b_conv2 = u(ks[3], (C2_OUT,), C2_IN * 9)
    w_fc1 = u(ks[4], (FC1_OUT, FC1_IN), FC1_IN)
    b_fc1 = u(ks[5], (FC1_OUT,), FC1_IN)
    w_fc2 = u(ks[6], (FC2_OUT, FC2_IN), FC2_IN)
    b_fc2 = u(ks[7], (FC2_OUT,), FC2_IN)
    return dict(w_conv1=w_conv1, b_conv1=b_conv1,
                w_conv2=w_conv2, b_conv2=b_conv2,
                w_fc1=w_fc1, b_fc1=b_fc1,
                w_fc2=w_fc2, b_fc2=b_fc2)


def prepare_params(params):
    """One-time expansion: conv->matmul matrices, lane-padded fc1 weights,
    bf16 MXU operands, f32 biases, fc2 as a broadcast row (VPU path)."""
    M1 = conv3x3_as_matrix(np.asarray(params["w_conv1"]))          # (16, 128)
    M2 = conv3x3_as_matrix(np.asarray(params["w_conv2"]))          # (128, 256)

    bc1 = np.repeat(np.asarray(params["b_conv1"]), H * W).reshape(1, H1_DIM)
    bc2 = np.repeat(np.asarray(params["b_conv2"]), H * W).reshape(1, H2_DIM)

    # fc1: (16, 256) weight -> transpose and zero-pad columns to 128 lanes.
    w1t = np.zeros((H2_DIM, LANE), np.float32)
    w1t[:, :FC1_OUT] = np.asarray(params["w_fc1"]).T
    bf1 = np.zeros((1, LANE), np.float32)
    bf1[0, :FC1_OUT] = np.asarray(params["b_fc1"])

    # fc2: (1, 16) weight -> broadcast row over 128 lanes (VPU mul + lane-sum);
    # no padded MXU matmul.
    w2 = np.zeros((1, LANE), np.float32)
    w2[0, :FC2_IN] = np.asarray(params["w_fc2"]).reshape(-1)
    b2 = np.asarray(params["b_fc2"], np.float32).reshape(1, 1)

    return dict(
        M1=jnp.asarray(M1, jnp.bfloat16),
        M2=jnp.asarray(M2, jnp.bfloat16),
        w1t=jnp.asarray(w1t, jnp.bfloat16),
        bc1=jnp.asarray(bc1, jnp.float32),
        bc2=jnp.asarray(bc2, jnp.float32),
        bf1=jnp.asarray(bf1, jnp.float32),
        w2=jnp.asarray(w2, jnp.float32),
        b2=jnp.asarray(b2, jnp.float32),
    )


# ---------------------------------------------------------------------------
# Pallas kernel: one batch tile, sub-tiled internally over SUB-row blocks
# ---------------------------------------------------------------------------
def make_kernel(tb, sub):
    assert tb % sub == 0
    n_sub = tb // sub

    def kernel(x_ref, m1_ref, bc1_ref, m2_ref, bc2_ref,
               w1t_ref, bf1_ref, w2_ref, b2_ref, out_ref):
        def body(s, carry):
            r0 = pl.multiple_of(s * sub, sub)
            x = x_ref[pl.ds(r0, sub), :]                           # (sub, 16) bf16

            # conv1 (as matmul) + bias + ReLU, f32 acc, bf16 for next MXU op.
            h1 = jnp.dot(x, m1_ref[...], preferred_element_type=jnp.float32)
            h1 = jnp.maximum(h1 + bc1_ref[...], 0.0).astype(jnp.bfloat16)

            # conv2 + bias + ReLU.
            h2 = jnp.dot(h1, m2_ref[...], preferred_element_type=jnp.float32)
            h2 = jnp.maximum(h2 + bc2_ref[...], 0.0).astype(jnp.bfloat16)

            # fc1 (lane-padded to 128) + bias + ReLU; stays f32.
            h3 = jnp.dot(h2, w1t_ref[...], preferred_element_type=jnp.float32)
            h3 = jnp.maximum(h3 + bf1_ref[...], 0.0)               # (sub, 128) f32

            # fc2 as VPU multiply + lane reduction (XLU); no padded MXU matmul.
            logit = jnp.sum(h3 * w2_ref[...], axis=-1, keepdims=True)
            out_ref[pl.ds(r0, sub), :] = logit + b2_ref[...]       # (sub, 1) f32
            return carry

        lax.fori_loop(0, n_sub, body, 0, unroll=True)

    return kernel


def mycnn_forward(x, prepared, tb_max=None):
    """x: any array reshapable to (-1, 1, 4, 4) -> returns (B, 1) float32."""
    if tb_max is None:
        tb_max = _default_tb_max()

    x2d = jnp.reshape(x, (-1, X_DIM)).astype(jnp.bfloat16)         # (B, 16)
    B = x2d.shape[0]

    tb, n_tiles = _choose_tiling(B, tb_max)
    B_pad = tb * n_tiles
    if B_pad != B:
        x2d = jnp.pad(x2d, ((0, B_pad - B), (0, 0)))
    sub = min(SUB_ROWS, tb)

    def bcast(shape):
        # Whole weight/bias array, same block for every grid step (resident).
        return pl.BlockSpec(shape, lambda i: (0, 0))

    out = pl.pallas_call(
        make_kernel(tb, sub),
        out_shape=jax.ShapeDtypeStruct((B_pad, FC2_OUT), jnp.float32),
        grid_spec=pltpu.PrefetchScalarGridSpec(
            num_scalar_prefetch=0,
            grid=(n_tiles,),
            in_specs=[
                pl.BlockSpec((tb, X_DIM), lambda i: (i, 0)),       # x tile
                bcast((X_DIM, H1_DIM)),                            # M1
                bcast((1, H1_DIM)),                                # bc1
                bcast((H1_DIM, H2_DIM)),                           # M2
                bcast((1, H2_DIM)),                                # bc2
                bcast((H2_DIM, LANE)),                             # w1t (padded)
                bcast((1, LANE)),                                  # bf1 (padded)
                bcast((1, LANE)),                                  # w2 row
                bcast((1, 1)),                                     # b2
            ],
            out_specs=pl.BlockSpec((tb, FC2_OUT), lambda i: (i, 0)),
        ),
        compiler_params=pltpu.CompilerParams(
            dimension_semantics=("parallel",),     # shard batch tiles over TCs
        ),
    )(x2d, prepared["M1"], prepared["bc1"], prepared["M2"], prepared["bc2"],
      prepared["w1t"], prepared["bf1"], prepared["w2"], prepared["b2"])

    return out[:B, :]                                              # (B, 1) f32


# ---------------------------------------------------------------------------
# Pure-JAX reference (mirrors the PyTorch forward) for a correctness check
# ---------------------------------------------------------------------------
def reference_forward(x, params):
    x4 = jnp.reshape(x, (-1, C1_IN, H, W)).astype(jnp.float32)
    dn = ("NCHW", "OIHW", "NCHW")
    h = lax.conv_general_dilated(x4, params["w_conv1"], (1, 1), "SAME",
                                 dimension_numbers=dn)
    h = jax.nn.relu(h + params["b_conv1"][None, :, None, None])
    h = lax.conv_general_dilated(h, params["w_conv2"], (1, 1), "SAME",
                                 dimension_numbers=dn)
    h = jax.nn.relu(h + params["b_conv2"][None, :, None, None])
    h = h.reshape(h.shape[0], -1)                                  # NCHW flatten
    h = jax.nn.relu(h @ params["w_fc1"].T + params["b_fc1"])
    return h @ params["w_fc2"].T + params["b_fc2"]


if __name__ == "__main__":
    key = jax.random.PRNGKey(0)
    k_param, k_x1, k_x2 = jax.random.split(key, 3)

    params = init_params(k_param)
    prepared = prepare_params(params)          # one-time, hoisted out of forward

    # Small NCHW batch.
    x = jax.random.normal(k_x1, (8, 1, 4, 4), jnp.float32)
    out = jax.block_until_ready(mycnn_forward(x, prepared))
    ref = reference_forward(x, params)
    assert out.shape == (8, 1), out.shape
    # bf16 MXU operands with f32 accumulation -> slightly looser tolerance.
    np.testing.assert_allclose(np.asarray(out), np.asarray(ref),
                               rtol=2e-2, atol=2e-2)

    # Odd batch exercises the even-split / padded-tile path (grid >= 2).
    x2 = jax.random.normal(k_x2, (37, 16), jnp.float32)
    out2 = jax.block_until_ready(mycnn_forward(x2, prepared))
    ref2 = reference_forward(x2, params)
    assert out2.shape == (37, 1), out2.shape
    np.testing.assert_allclose(np.asarray(out2), np.asarray(ref2),
                               rtol=2e-2, atol=2e-2)

    print("KERNEL_OK")
</pallas_src>

<mosaic_0001>
module attributes {stable_mosaic.version = 11 : i64} {
  func.func @kernel(%arg0: i32, %arg1: memref<16x16xbf16, #tpu.memory_space<vmem>>, %arg2: memref<16x128xbf16, #tpu.memory_space<vmem>>, %arg3: memref<1x128xf32, #tpu.memory_space<vmem>>, %arg4: memref<128x256xbf16, #tpu.memory_space<vmem>>, %arg5: memref<1x256xf32, #tpu.memory_space<vmem>>, %arg6: memref<256x128xbf16, #tpu.memory_space<vmem>>, %arg7: memref<1x128xf32, #tpu.memory_space<vmem>>, %arg8: memref<1x128xf32, #tpu.memory_space<vmem>>, %arg9: memref<1x1xf32, #tpu.memory_space<vmem>>, %arg10: memref<16x1xf32, #tpu.memory_space<vmem>>) attributes {dimension_semantics = [#tpu.dimension_semantics<parallel>], iteration_bounds = array<i64: 1>, scalar_prefetch = 0 : i64, scratch_operands = 0 : i64, tpu.core_type = #tpu.core_type<tc>, window_params = [{transform_indices = @transform_0, window_bounds = array<i64: 16, 16>}, {pipeline_mode = #tpu.pipeline_mode<synchronous>, transform_indices = @transform_1, window_bounds = array<i64: 16, 128>}, {pipeline_mode = #tpu.pipeline_mode<synchronous>, transform_indices = @transform_2, window_bounds = array<i64: 1, 128>}, {pipeline_mode = #tpu.pipeline_mode<synchronous>, transform_indices = @transform_3, window_bounds = array<i64: 128, 256>}, {pipeline_mode = #tpu.pipeline_mode<synchronous>, transform_indices = @transform_4, window_bounds = array<i64: 1, 256>}, {pipeline_mode = #tpu.pipeline_mode<synchronous>, transform_indices = @transform_5, window_bounds = array<i64: 256, 128>}, {pipeline_mode = #tpu.pipeline_mode<synchronous>, transform_indices = @transform_6, window_bounds = array<i64: 1, 128>}, {pipeline_mode = #tpu.pipeline_mode<synchronous>, transform_indices = @transform_7, window_bounds = array<i64: 1, 128>}, {pipeline_mode = #tpu.pipeline_mode<synchronous>, transform_indices = @transform_8, window_bounds = array<i64: 1, 1>}, {transform_indices = @transform_9, window_bounds = array<i64: 16, 1>}]} {
    %c0_i32 = arith.constant 0 : i32
    %c16_i32 = arith.constant 16 : i32
    %0 = arith.muli %c0_i32, %c16_i32 : i32
    %1 = tpu.assume_multiple %0, 16 : i32
    %2 = arith.index_cast %1 : i32 to index
    %c0 = arith.constant 0 : index
    %3 = vector.load %arg1[%2, %c0] : memref<16x16xbf16, #tpu.memory_space<vmem>>, vector<16x16xbf16>
    %c0_0 = arith.constant 0 : index
    %c0_1 = arith.constant 0 : index
    %4 = vector.load %arg2[%c0_0, %c0_1] : memref<16x128xbf16, #tpu.memory_space<vmem>>, vector<16x128xbf16>
    %cst = arith.constant dense<0.000000e+00> : vector<16x128xf32>
    %5 = tpu.matmul %3, %4, %cst {dimension_numbers = #tpu.dot_dimension_numbers<[1], [0], [0], [1], [0, 0, 1, 1], [], []>} : vector<16x16xbf16>, vector<16x128xbf16>, vector<16x128xf32> -> vector<16x128xf32>
    %c0_2 = arith.constant 0 : index
    %c0_3 = arith.constant 0 : index
    %6 = vector.load %arg3[%c0_2, %c0_3] : memref<1x128xf32, #tpu.memory_space<vmem>>, vector<1x128xf32>
    %7 = vector.broadcast %6 : vector<1x128xf32> to vector<16x128xf32>
    %8 = arith.addf %5, %7 : vector<16x128xf32>
    %cst_4 = arith.constant 0.000000e+00 : f32
    %9 = vector.broadcast %cst_4 : f32 to vector<16x128xf32>
    %10 = arith.maximumf %8, %9 : vector<16x128xf32>
    %11 = arith.truncf %10 : vector<16x128xf32> to vector<16x128xbf16>
    %c0_5 = arith.constant 0 : index
    %c0_6 = arith.constant 0 : index
    %12 = vector.load %arg4[%c0_5, %c0_6] : memref<128x256xbf16, #tpu.memory_space<vmem>>, vector<128x256xbf16>
    %cst_7 = arith.constant dense<0.000000e+00> : vector<16x256xf32>
    %13 = tpu.matmul %11, %12, %cst_7 {dimension_numbers = #tpu.dot_dimension_numbers<[1], [0], [0], [1], [0, 0, 1, 1], [], []>} : vector<16x128xbf16>, vector<128x256xbf16>, vector<16x256xf32> -> vector<16x256xf32>
    %c0_8 = arith.constant 0 : index
    %c0_9 = arith.constant 0 : index
    %14 = vector.load %arg5[%c0_8, %c0_9] : memref<1x256xf32, #tpu.memory_space<vmem>>, vector<1x256xf32>
    %15 = vector.broadcast %14 : vector<1x256xf32> to vector<16x256xf32>
    %16 = arith.addf %13, %15 : vector<16x256xf32>
    %cst_10 = arith.constant 0.000000e+00 : f32
    %17 = vector.broadcast %cst_10 : f32 to vector<16x256xf32>
    %18 = arith.maximumf %16, %17 : vector<16x256xf32>
    %19 = arith.truncf %18 : vector<16x256xf32> to vector<16x256xbf16>
    %c0_11 = arith.constant 0 : index
    %c0_12 = arith.constant 0 : index
    %20 = vector.load %arg6[%c0_11, %c0_12] : memref<256x128xbf16, #tpu.memory_space<vmem>>, vector<256x128xbf16>
    %cst_13 = arith.constant dense<0.000000e+00> : vector<16x128xf32>
    %21 = tpu.matmul %19, %20, %cst_13 {dimension_numbers = #tpu.dot_dimension_numbers<[1], [0], [0], [1], [0, 0, 1, 1], [], []>} : vector<16x256xbf16>, vector<256x128xbf16>, vector<16x128xf32> -> vector<16x128xf32>
    %c0_14 = arith.constant 0 : index
    %c0_15 = arith.constant 0 : index
    %22 = vector.load %arg7[%c0_14, %c0_15] : memref<1x128xf32, #tpu.memory_space<vmem>>, vector<1x128xf32>
    %23 = vector.broadcast %22 : vector<1x128xf32> to vector<16x128xf32>
    %24 = arith.addf %21, %23 : vector<16x128xf32>
    %cst_16 = arith.constant 0.000000e+00 : f32
    %25 = vector.broadcast %cst_16 : f32 to vector<16x128xf32>
    %26 = arith.maximumf %24, %25 : vector<16x128xf32>
    %c0_17 = arith.constant 0 : index
    %c0_18 = arith.constant 0 : index
    %27 = vector.load %arg8[%c0_17, %c0_18] : memref<1x128xf32, #tpu.memory_space<vmem>>, vector<1x128xf32>
    %28 = vector.broadcast %27 : vector<1x128xf32> to vector<16x128xf32>
    %29 = arith.mulf %26, %28 : vector<16x128xf32>
    %cst_19 = arith.constant dense<0.000000e+00> : vector<16xf32>
    %30 = vector.multi_reduction <add>, %29, %cst_19 [1] : vector<16x128xf32> to vector<16xf32>
    %31 = vector.shape_cast %30 : vector<16xf32> to vector<16x1xf32>
    %c0_20 = arith.constant 0 : index
    %c0_21 = arith.constant 0 : index
    %32 = vector.load %arg9[%c0_20, %c0_21] : memref<1x1xf32, #tpu.memory_space<vmem>>, vector<1x1xf32>
    %33 = vector.broadcast %32 : vector<1x1xf32> to vector<16x1xf32>
    %34 = arith.addf %31, %33 : vector<16x1xf32>
    %35 = arith.index_cast %1 : i32 to index
    %c0_22 = arith.constant 0 : index
    %36 = vector.load %arg10[%35, %c0_22] : memref<16x1xf32, #tpu.memory_space<vmem>>, vector<16x1xf32>
    tpu.vector_store %arg10[%35, %c0_22], %34 {strides = array<i32>} : memref<16x1xf32, #tpu.memory_space<vmem>>, vector<16x1xf32>,
    %c1_i32 = arith.constant 1 : i32
    return
  }
  func.func @transform_0(%arg0: i32) -> (i32, i32) {
    %c0_i32 = arith.constant 0 : i32
    %c0_i32_0 = arith.constant 0 : i32
    return %arg0, %c0_i32 : i32, i32
  }
  func.func @transform_1(%arg0: i32) -> (i32, i32) {
    %c0_i32 = arith.constant 0 : i32
    %c0_i32_0 = arith.constant 0 : i32
    %c0_i32_1 = arith.constant 0 : i32
    return %c0_i32, %c0_i32_0 : i32, i32
  }
  func.func @transform_2(%arg0: i32) -> (i32, i32) {
    %c0_i32 = arith.constant 0 : i32
    %c0_i32_0 = arith.constant 0 : i32
    %c0_i32_1 = arith.constant 0 : i32
    return %c0_i32, %c0_i32_0 : i32, i32
  }
  func.func @transform_3(%arg0: i32) -> (i32, i32) {
    %c0_i32 = arith.constant 0 : i32
    %c0_i32_0 = arith.constant 0 : i32
    %c0_i32_1 = arith.constant 0 : i32
    return %c0_i32, %c0_i32_0 : i32, i32
  }
  func.func @transform_4(%arg0: i32) -> (i32, i32) {
    %c0_i32 = arith.constant 0 : i32
    %c0_i32_0 = arith.constant 0 : i32
    %c0_i32_1 = arith.constant 0 : i32
    return %c0_i32, %c0_i32_0 : i32, i32
  }
  func.func @transform_5(%arg0: i32) -> (i32, i32) {
    %c0_i32 = arith.constant 0 : i32
    %c0_i32_0 = arith.constant 0 : i32
    %c0_i32_1 = arith.constant 0 : i32
    return %c0_i32, %c0_i32_0 : i32, i32
  }
  func.func @transform_6(%arg0: i32) -> (i32, i32) {
    %c0_i32 = arith.constant 0 : i32
    %c0_i32_0 = arith.constant 0 : i32
    %c0_i32_1 = arith.constant 0 : i32
    return %c0_i32, %c0_i32_0 : i32, i32
  }
  func.func @transform_7(%arg0: i32) -> (i32, i32) {
    %c0_i32 = arith.constant 0 : i32
    %c0_i32_0 = arith.constant 0 : i32
    %c0_i32_1 = arith.constant 0 : i32
    return %c0_i32, %c0_i32_0 : i32, i32
  }
  func.func @transform_8(%arg0: i32) -> (i32, i32) {
    %c0_i32 = arith.constant 0 : i32
    %c0_i32_0 = arith.constant 0 : i32
    %c0_i32_1 = arith.constant 0 : i32
    return %c0_i32, %c0_i32_0 : i32, i32
  }
  func.func @transform_9(%arg0: i32) -> (i32, i32) {
    %c0_i32 = arith.constant 0 : i32
    %c0_i32_0 = arith.constant 0 : i32
    return %arg0, %c0_i32 : i32, i32
  }
}

</mosaic_0001>

<llo_original>
// kernel: tpu_custom_call.1
$region0: #{tpu_custom_call.1}
  #allocation0 [shape = 'u32[]', space=smem, size = 0x4, offset = 0x4, fixed_abs, tag = 'smem constant byte address 0x4 - core index']
  #allocation1 [shape = 'u32[144,128]{1,0:T(1,128)}', space=vmem, size = 0x12000, scoped, tag = 'internal scratch']
  #allocation2 [shape = 'f32[1,1]{1,0:T(1,128)S(1)}', space=vmem, size = 0x200, scoped, tag = 'scoped memory for tpu_custom_call.1']
  %s0 = inlined_call_operand.hbm [shape: bf16[16,16], index: 0, kind: input, shape index: {}]
  %s1 = inlined_call_operand.hbm [shape: bf16[16,128], index: 1, kind: input, shape index: {}]
  %s2 = inlined_call_operand.vmem [shape: f32[1,128], index: 2, kind: input, shape index: {}]
  %s3 = inlined_call_operand.hbm [shape: bf16[128,256], index: 3, kind: input, shape index: {}]
  %s4 = inlined_call_operand.vmem [shape: f32[1,256], index: 4, kind: input, shape index: {}]
  %s5 = inlined_call_operand.hbm [shape: bf16[256,128], index: 5, kind: input, shape index: {}]
  %s6 = inlined_call_operand.vmem [shape: f32[1,128], index: 6, kind: input, shape index: {}]
  %s7 = inlined_call_operand.vmem [shape: f32[1,128], index: 7, kind: input, shape index: {}]
  %s8 = inlined_call_operand.<no memory space> [shape: f32[1,1], index: 8, kind: input, shape index: {}]
  %s9 = inlined_call_operand.vmem [shape: f32[16,1], index: 9, kind: output, shape index: {}]
  %s10 = sld [smem:[#allocation0]]
  $region62: #{tpu_custom_call.1} parent=0
    _
  %s12 = ssub.s32 1, %s10
  %s13 = scalar_select 0, %s12, %s10
  %v14 = vstv %s8
  %15 = vst [vmem:[#allocation2] sm:$0x1] %v14
  $region1: #{tpu_custom_call.1} parent=0
    #allocation3 [shape = 'u8[4096]{0}', space=vmem, size = 0x1000, scoped, tag = 'input window, operand 0, single buffered']
    #allocation4 [shape = 's32[1]{0}', space=sflag, size = 0x4, scoped, tag = 'scoped memory for tpu_custom_call.1']
    #allocation5 [shape = 'u8[4096]{0}', space=vmem, size = 0x1000, scoped, tag = 'input window, operand 1, single buffered']
    #allocation6 [shape = 's32[1]{0}', space=sflag, size = 0x4, scoped, tag = 'scoped memory for tpu_custom_call.1']
    #allocation7 [shape = 'u8[65536]{0}', space=vmem, size = 0x10000, scoped, tag = 'input window, operand 3, single buffered']
    #allocation8 [shape = 'u8[65536]{0}', space=vmem, size = 0x10000, scoped, tag = 'input window, operand 5, single buffered']
    #allocation9 [shape = 's32[1]{0}', space=sflag, size = 0x4, scoped, tag = 'scoped memory for tpu_custom_call.1']
    %16 = vsyncpa [#allocation4], 0
    %17 = vsyncpa [#allocation6], 0
    %18 = vsyncpa [#allocation9], 0
    // Predicated region
    $region2: #{tpu_custom_call.1} parent=1 // pred_check
      _
    $region3: #{tpu_custom_call.1} parent=1 // pred_check_branch
      %20 = sbr.rel (0) target = $region5
    $region4: #{tpu_custom_call.1} parent=1 // pred_region
      %s22 = ssub.s32 128, 128
      %23 = vsyncadd [#allocation4], %s22
      %s24 = sshll.u32 [#allocation3], 4
      %s25 = int_to_ptr.vmem [resolvable:$true] %s24
      %30 = dma.hbm_to_vmem [thread:$0]  %s0, 128, %s25, [#allocation4], 64, 64, 4
    $region5: #{tpu_custom_call.1} parent=1 // pred_fallthru
      _
    // Predicated region
    $region6: #{tpu_custom_call.1} parent=1 // pred_check
      _
    $region7: #{tpu_custom_call.1} parent=1 // pred_check_branch
      %32 = sbr.rel (0) target = $region9
    $region8: #{tpu_custom_call.1} parent=1 // pred_region
      %s34 = ssub.s32 128, 128
      %35 = vsyncadd [#allocation6], %s34
      %s36 = sshll.u32 [#allocation5], 4
      %s37 = int_to_ptr.vmem [resolvable:$true] %s36
      %42 = dma.hbm_to_vmem [thread:$0]  %s1, 128, %s37, [#allocation6], 64, 64, 4
    $region9: #{tpu_custom_call.1} parent=1 // pred_fallthru
      _
    // Predicated region
    $region10: #{tpu_custom_call.1} parent=1 // pred_check
      _
    $region11: #{tpu_custom_call.1} parent=1 // pred_check_branch
      %44 = sbr.rel (0) target = $region13
    $region12: #{tpu_custom_call.1} parent=1 // pred_region
      _
    $region13: #{tpu_custom_call.1} parent=1 // pred_fallthru
      _
    // Predicated region
    $region14: #{tpu_custom_call.1} parent=1 // pred_check
      _
    $region15: #{tpu_custom_call.1} parent=1 // pred_check_branch
      %46 = sbr.rel (0) target = $region17
    $region16: #{tpu_custom_call.1} parent=1 // pred_region
      %s48 = ssub.s32 2048, 2048
      %49 = vsyncadd [#allocation6], %s48
      %s50 = sshll.u32 [#allocation7], 4
      %s51 = int_to_ptr.vmem [resolvable:$true] %s50
      %56 = dma.hbm_to_vmem [thread:$0]  %s3, 2048, %s51, [#allocation6], 128, 128, 8
    $region17: #{tpu_custom_call.1} parent=1 // pred_fallthru
      _
    // Predicated region
    $region18: #{tpu_custom_call.1} parent=1 // pred_check
      _
    $region19: #{tpu_custom_call.1} parent=1 // pred_check_branch
      %58 = sbr.rel (0) target = $region21
    $region20: #{tpu_custom_call.1} parent=1 // pred_region
      _
    $region21: #{tpu_custom_call.1} parent=1 // pred_fallthru
      _
    // Predicated region
    $region22: #{tpu_custom_call.1} parent=1 // pred_check
      _
    $region23: #{tpu_custom_call.1} parent=1 // pred_check_branch
      %60 = sbr.rel (0) target = $region25
    $region24: #{tpu_custom_call.1} parent=1 // pred_region
      %s62 = ssub.s32 2048, 2048
      %63 = vsyncadd [#allocation9], %s62
      %s64 = sshll.u32 [#allocation8], 4
      %s65 = int_to_ptr.vmem [resolvable:$true] %s64
      %70 = dma.hbm_to_vmem [thread:$0]  %s5, 2048, %s65, [#allocation9], 64, 64, 4
    $region25: #{tpu_custom_call.1} parent=1 // pred_fallthru
      _
    // Predicated region
    $region26: #{tpu_custom_call.1} parent=1 // pred_check
      _
    $region27: #{tpu_custom_call.1} parent=1 // pred_check_branch
      %72 = sbr.rel (0) target = $region29
    $region28: #{tpu_custom_call.1} parent=1 // pred_region
      _
    $region29: #{tpu_custom_call.1} parent=1 // pred_fallthru
      _
    // Predicated region
    $region30: #{tpu_custom_call.1} parent=1 // pred_check
      _
    $region31: #{tpu_custom_call.1} parent=1 // pred_check_branch
      %74 = sbr.rel (0) target = $region33
    $region32: #{tpu_custom_call.1} parent=1 // pred_region
      _
    $region33: #{tpu_custom_call.1} parent=1 // pred_fallthru
      _
    // Predicated region
    $region34: #{tpu_custom_call.1} parent=1 // pred_check
      _
    $region35: #{tpu_custom_call.1} parent=1 // pred_check_branch
      %76 = sbr.rel (0) target = $region37
    $region36: #{tpu_custom_call.1} parent=1 // pred_region
      _
    $region37: #{tpu_custom_call.1} parent=1 // pred_fallthru
      _
    // Predicated region
    $region38: #{tpu_custom_call.1} parent=1 // pred_check
      _
    $region39: #{tpu_custom_call.1} parent=1 // pred_check_branch
      %78 = sbr.rel (0) target = $region41
    $region40: #{tpu_custom_call.1} parent=1 // pred_region
      %79 = dma.done [#allocation4], 128
    $region41: #{tpu_custom_call.1} parent=1 // pred_fallthru
      _
    // Predicated region
    $region42: #{tpu_custom_call.1} parent=1 // pred_check
      _
    $region43: #{tpu_custom_call.1} parent=1 // pred_check_branch
      %81 = sbr.rel (0) target = $region45
    $region44: #{tpu_custom_call.1} parent=1 // pred_region
      %82 = dma.done [#allocation6], 128
    $region45: #{tpu_custom_call.1} parent=1 // pred_fallthru
      _
    // Predicated region
    $region46: #{tpu_custom_call.1} parent=1 // pred_check
      _
    $region47: #{tpu_custom_call.1} parent=1 // pred_check_branch
      %84 = sbr.rel (0) target = $region49
    $region48: #{tpu_custom_call.1} parent=1 // pred_region
      %85 = dma.done [#allocation6], 2048
    $region49: #{tpu_custom_call.1} parent=1 // pred_fallthru
      _
    // Predicated region
    $region50: #{tpu_custom_call.1} parent=1 // pred_check
      _
    $region51: #{tpu_custom_call.1} parent=1 // pred_check_branch
      %87 = sbr.rel (0) target = $region53
    $region52: #{tpu_custom_call.1} parent=1 // pred_region
      %88 = dma.done [#allocation9], 2048
    $region53: #{tpu_custom_call.1} parent=1 // pred_fallthru
      _
    %v90 = vld [vmem:[#allocation3] sm:$0xf]
    %v91 = vld [vmem:[#allocation3 + $0x4] sm:$0xf]
    %v92 = vld [vmem:[#allocation5] sm:$0xf]
    %v93 = vld [vmem:[#allocation5 + $0x4] sm:$0xf]
    %v94 = vld [vmem:[%s2] sm:$0x1]
    %v96 = vlaneseq
    %v97 = vshrl.u32 %v96, 7
    %v98 = vsub.s32 0, %v97
    %v99 = vrot.slane %v94, %v98
    %v103 = vunpack.c.l.b16 %v90
    %v104 = vunpack.c.l.b16 %v91
    %v105 = vpack.c.b16 %v104, %v103
    %v108 = vunpack.c.l.b16 %v92
    %v109 = vunpack.c.l.b16 %v93
    %v110 = vpack.c.b16 %v109, %v108
    %vm112 = vcmask 130048
    %v114 = vsel %vm112, %v105, 0
    %116 = vmatprep.subr.bf16.mxu0 0
    %117 = vmatpush1.bf16.msra.mxu0 %v110
    %118 = vmatprep.subr.bf16.mxu0 0
    %119 = vmatpush1.bf16.msra.mxu0 0
    %120 = vmatprep.subr.bf16.mxu0 0
    %121 = vmatpush1.bf16.msra.mxu0 0
    %122 = vmatprep.subr.bf16.mxu0 0
    %123 = vmatpush1.bf16.msra.mxu0 0
    %124 = vmatprep.subr.bf16.mxu0 0
    %125 = vmatpush1.bf16.msra.mxu0 0
    %126 = vmatprep.subr.bf16.mxu0 0
    %127 = vmatpush1.bf16.msra.mxu0 0
    %128 = vmatprep.subr.bf16.mxu0 0
    %129 = vmatpush1.bf16.msra.mxu0 0
    %130 = vmatprep.subr.bf16.mxu0 0
    %131 = vmatpush1.bf16.msra.mxu0 0
    %132 = vmatprep.subr.bf16.mxu0 0
    %133 = vmatpush1.bf16.msra.mxu0 0
    %134 = vmatprep.subr.bf16.mxu0 0
    %135 = vmatpush1.bf16.msra.mxu0 0
    %136 = vmatprep.subr.bf16.mxu0 0
    %137 = vmatpush1.bf16.msra.mxu0 0
    %138 = vmatprep.subr.bf16.mxu0 0
    %139 = vmatpush1.bf16.msra.mxu0 0
    %140 = vmatprep.subr.bf16.mxu0 0
    %141 = vmatpush1.bf16.msra.mxu0 0
    %142 = vmatprep.subr.bf16.mxu0 0
    %143 = vmatpush1.bf16.msra.mxu0 0
    %144 = vmatprep.subr.bf16.mxu0 0
    %145 = vmatpush1.bf16.msra.mxu0 0
    %146 = vmatprep.subr.bf16.mxu0 0
    %147 = vmatpush1.bf16.msra.mxu0 0
    %148 = vmatprep.mubr.bf16.mxu0 0
    %149 = vmatmul.mubr.bf16.gmra.mrb[0].mxu0 %v114
    %v150 = vpop.f32.mrb[0].mxu0
    %v151 = vadd.f32 %v99, %v150
    %v152 = vpop.f32.mrb[0].mxu0
    %v153 = vpop.f32.mrb[0].mxu0
    %v154 = vadd.f32 %v99, %v153
    %v155 = vpop.f32.mrb[0].mxu0
    %156 = vdwg.mxu0
    %v157 = vmax.f32 %v151, 0.0
    %v158 = vmax.f32 %v154, 0.0
    %v159 = vpack.c.bf16 %v158, %v157
    %v160 = vld [vmem:[#allocation7] sm:$0xff]
    %v161 = vld [vmem:[#allocation7 + $0x8] sm:$0xff]
    %v162 = vld [vmem:[#allocation7 + $0x10] sm:$0xff]
    %v163 = vld [vmem:[#allocation7 + $0x18] sm:$0xff]
    %v164 = vld [vmem:[#allocation7 + $0x20] sm:$0xff]
    %v165 = vld [vmem:[#allocation7 + $0x28] sm:$0xff]
    %v166 = vld [vmem:[#allocation7 + $0x30] sm:$0xff]
    %v167 = vld [vmem:[#allocation7 + $0x38] sm:$0xff]
    %v168 = vld [vmem:[#allocation7 + $0x40] sm:$0xff]
    %v169 = vld [vmem:[#allocation7 + $0x48] sm:$0xff]
    %v170 = vld [vmem:[#allocation7 + $0x50] sm:$0xff]
    %v171 = vld [vmem:[#allocation7 + $0x58] sm:$0xff]
    %v172 = vld [vmem:[#allocation7 + $0x60] sm:$0xff]
    %v173 = vld [vmem:[#allocation7 + $0x68] sm:$0xff]
    %v174 = vld [vmem:[#allocation7 + $0x70] sm:$0xff]
    %v175 = vld [vmem:[#allocation7 + $0x78] sm:$0xff]
    %v176 = vld [vmem:[%s4] sm:$0x3]
    %v178 = vlaneseq
    %v179 = vshrl.u32 %v178, 7
    %v180 = vsub.s32 0, %v179
    %v181 = vrot.slane %v176, %v180
    %v182 = vlaneseq
    %v183 = vshrl.u32 %v182, 7
    %v184 = vsub.s32 1, %v183
    %v185 = vrot.slane %v176, %v184
    %v204 = vunpack.c.l.b16 %v160
    %v205 = vunpack.c.h.b16 %v160
    %v206 = vunpack.c.l.b16 %v161
    %v207 = vunpack.c.h.b16 %v161
    %v208 = vunpack.c.l.b16 %v162
    %v209 = vunpack.c.h.b16 %v162
    %v210 = vunpack.c.l.b16 %v163
    %v211 = vunpack.c.h.b16 %v163
    %v212 = vunpack.c.l.b16 %v164
    %v213 = vunpack.c.h.b16 %v164
    %v214 = vunpack.c.l.b16 %v165
    %v215 = vunpack.c.h.b16 %v165
    %v216 = vunpack.c.l.b16 %v166
    %v217 = vunpack.c.h.b16 %v166
    %v218 = vunpack.c.l.b16 %v167
    %v219 = vunpack.c.h.b16 %v167
    %v220 = vunpack.c.l.b16 %v168
    %v221 = vunpack.c.h.b16 %v168
    %v222 = vunpack.c.l.b16 %v169
    %v223 = vunpack.c.h.b16 %v169
    %v224 = vunpack.c.l.b16 %v170
    %v225 = vunpack.c.h.b16 %v170
    %v226 = vunpack.c.l.b16 %v171
    %v227 = vunpack.c.h.b16 %v171
    %v228 = vunpack.c.l.b16 %v172
    %v229 = vunpack.c.h.b16 %v172
    %v230 = vunpack.c.l.b16 %v173
    %v231 = vunpack.c.h.b16 %v173
    %v232 = vunpack.c.l.b16 %v174
    %v233 = vunpack.c.h.b16 %v174
    %v234 = vunpack.c.l.b16 %v175
    %v235 = vunpack.c.h.b16 %v175
    %v236 = vpack.c.b16 %v206, %v204
    %v237 = vpack.c.b16 %v207, %v205
    %v238 = vpack.c.b16 %v210, %v208
    %v239 = vpack.c.b16 %v211, %v209
    %v240 = vpack.c.b16 %v214, %v212
    %v241 = vpack.c.b16 %v215, %v213
    %v242 = vpack.c.b16 %v218, %v216
    %v243 = vpack.c.b16 %v219, %v217
    %v244 = vpack.c.b16 %v222, %v220
    %v245 = vpack.c.b16 %v223, %v221
    %v246 = vpack.c.b16 %v226, %v224
    %v247 = vpack.c.b16 %v227, %v225
    %v248 = vpack.c.b16 %v230, %v228
    %v249 = vpack.c.b16 %v231, %v229
    %v250 = vpack.c.b16 %v234, %v232
    %v251 = vpack.c.b16 %v235, %v233
    %268 = vmatprep.subr.bf16.mxu0 %v237
    %269 = vmatpush1.bf16.msra.mxu0 %v236
    %270 = vmatprep.subr.bf16.mxu0 %v239
    %271 = vmatpush1.bf16.msra.mxu0 %v238
    %272 = vmatprep.subr.bf16.mxu0 %v241
    %273 = vmatpush1.bf16.msra.mxu0 %v240
    %274 = vmatprep.subr.bf16.mxu0 %v243
    %275 = vmatpush1.bf16.msra.mxu0 %v242
    %276 = vmatprep.subr.bf16.mxu0 %v245
    %277 = vmatpush1.bf16.msra.mxu0 %v244
    %278 = vmatprep.subr.bf16.mxu0 %v247
    %279 = vmatpush1.bf16.msra.mxu0 %v246
    %280 = vmatprep.subr.bf16.mxu0 %v249
    %281 = vmatpush1.bf16.msra.mxu0 %v248
    %282 = vmatprep.subr.bf16.mxu0 %v251
    %283 = vmatpush1.bf16.msra.mxu0 %v250
    %284 = vmatprep.subr.bf16.mxu0 0
    %285 = vmatpush1.bf16.msra.mxu0 0
    %286 = vmatprep.subr.bf16.mxu0 0
    %287 = vmatpush1.bf16.msra.mxu0 0
    %288 = vmatprep.subr.bf16.mxu0 0
    %289 = vmatpush1.bf16.msra.mxu0 0
    %290 = vmatprep.subr.bf16.mxu0 0
    %291 = vmatpush1.bf16.msra.mxu0 0
    %292 = vmatprep.subr.bf16.mxu0 0
    %293 = vmatpush1.bf16.msra.mxu0 0
    %294 = vmatprep.subr.bf16.mxu0 0
    %295 = vmatpush1.bf16.msra.mxu0 0
    %296 = vmatprep.subr.bf16.mxu0 0
    %297 = vmatpush1.bf16.msra.mxu0 0
    %298 = vmatprep.subr.bf16.mxu0 0
    %299 = vmatpush1.bf16.msra.mxu0 0
    %300 = vmatprep.mubr.bf16.mxu0 0
    %301 = vmatmul.mubr.bf16.gmra.mrb[0].mxu0 %v159
    %v302 = vpop.f32.mrb[0].mxu0
    %v303 = vadd.f32 %v181, %v302
    %v304 = vpop.f32.mrb[0].mxu0
    %v305 = vadd.f32 %v185, %v304
    %v306 = vpop.f32.mrb[0].mxu0
    %v307 = vadd.f32 %v181, %v306
    %v308 = vpop.f32.mrb[0].mxu0
    %v309 = vadd.f32 %v185, %v308
    %310 = vdwg.mxu0
    %v311 = vmax.f32 %v303, 0.0
    %v312 = vmax.f32 %v305, 0.0
    %v313 = vmax.f32 %v307, 0.0
    %v314 = vmax.f32 %v309, 0.0
    %v315 = vpack.c.bf16 %v313, %v311
    %v316 = vpack.c.bf16 %v314, %v312
    %v317 = vld [vmem:[#allocation8] sm:$0xf]
    %v318 = vld [vmem:[#allocation8 + $0x4] sm:$0xf]
    %v319 = vld [vmem:[#allocation8 + $0x8] sm:$0xf]
    %v320 = vld [vmem:[#allocation8 + $0xc] sm:$0xf]
    %v321 = vld [vmem:[#allocation8 + $0x10] sm:$0xf]
    %v322 = vld [vmem:[#allocation8 + $0x14] sm:$0xf]
    %v323 = vld [vmem:[#allocation8 + $0x18] sm:$0xf]
    %v324 = vld [vmem:[#allocation8 + $0x1c] sm:$0xf]
    %v325 = vld [vmem:[#allocation8 + $0x20] sm:$0xf]
    %v326 = vld [vmem:[#allocation8 + $0x24] sm:$0xf]
    %v327 = vld [vmem:[#allocation8 + $0x28] sm:$0xf]
    %v328 = vld [vmem:[#allocation8 + $0x2c] sm:$0xf]
    %v329 = vld [vmem:[#allocation8 + $0x30] sm:$0xf]
    %v330 = vld [vmem:[#allocation8 + $0x34] sm:$0xf]
    %v331 = vld [vmem:[#allocation8 + $0x38] sm:$0xf]
    %v332 = vld [vmem:[#allocation8 + $0x3c] sm:$0xf]
    %v333 = vld [vmem:[#allocation8 + $0x40] sm:$0xf]
    %v334 = vld [vmem:[#allocation8 + $0x44] sm:$0xf]
    %v335 = vld [vmem:[#allocation8 + $0x48] sm:$0xf]
    %v336 = vld [vmem:[#allocation8 + $0x4c] sm:$0xf]
    %v337 = vld [vmem:[#allocation8 + $0x50] sm:$0xf]
    %v338 = vld [vmem:[#allocation8 + $0x54] sm:$0xf]
    %v339 = vld [vmem:[#allocation8 + $0x58] sm:$0xf]
    %v340 = vld [vmem:[#allocation8 + $0x5c] sm:$0xf]
    %v341 = vld [vmem:[#allocation8 + $0x60] sm:$0xf]
    %v342 = vld [vmem:[#allocation8 + $0x64] sm:$0xf]
    %v343 = vld [vmem:[#allocation8 + $0x68] sm:$0xf]
    %v344 = vld [vmem:[#allocation8 + $0x6c] sm:$0xf]
    %v345 = vld [vmem:[#allocation8 + $0x70] sm:$0xf]
    %v346 = vld [vmem:[#allocation8 + $0x74] sm:$0xf]
    %v347 = vld [vmem:[#allocation8 + $0x78] sm:$0xf]
    %v348 = vld [vmem:[#allocation8 + $0x7c] sm:$0xf]
    %v349 = vld [vmem:[%s6] sm:$0x1]
    %v351 = vlaneseq
    %v352 = vshrl.u32 %v351, 7
    %v353 = vsub.s32 0, %v352
    %v354 = vrot.slane %v349, %v353
    %v388 = vunpack.c.l.b16 %v317
    %v389 = vunpack.c.l.b16 %v318
    %v390 = vunpack.c.l.b16 %v319
    %v391 = vunpack.c.l.b16 %v320
    %v392 = vunpack.c.l.b16 %v321
    %v393 = vunpack.c.l.b16 %v322
    %v394 = vunpack.c.l.b16 %v323
    %v395 = vunpack.c.l.b16 %v324
    %v396 = vunpack.c.l.b16 %v325
    %v397 = vunpack.c.l.b16 %v326
    %v398 = vunpack.c.l.b16 %v327
    %v399 = vunpack.c.l.b16 %v328
    %v400 = vunpack.c.l.b16 %v329
    %v401 = vunpack.c.l.b16 %v330
    %v402 = vunpack.c.l.b16 %v331
    %v403 = vunpack.c.l.b16 %v332
    %v404 = vunpack.c.l.b16 %v333
    %v405 = vunpack.c.l.b16 %v334
    %v406 = vunpack.c.l.b16 %v335
    %v407 = vunpack.c.l.b16 %v336
    %v408 = vunpack.c.l.b16 %v337
    %v409 = vunpack.c.l.b16 %v338
    %v410 = vunpack.c.l.b16 %v339
    %v411 = vunpack.c.l.b16 %v340
    %v412 = vunpack.c.l.b16 %v341
    %v413 = vunpack.c.l.b16 %v342
    %v414 = vunpack.c.l.b16 %v343
    %v415 = vunpack.c.l.b16 %v344
    %v416 = vunpack.c.l.b16 %v345
    %v417 = vunpack.c.l.b16 %v346
    %v418 = vunpack.c.l.b16 %v347
    %v419 = vunpack.c.l.b16 %v348
    %v420 = vpack.c.b16 %v389, %v388
    %v421 = vpack.c.b16 %v391, %v390
    %v422 = vpack.c.b16 %v393, %v392
    %v423 = vpack.c.b16 %v395, %v394
    %v424 = vpack.c.b16 %v397, %v396
    %v425 = vpack.c.b16 %v399, %v398
    %v426 = vpack.c.b16 %v401, %v400
    %v427 = vpack.c.b16 %v403, %v402
    %v428 = vpack.c.b16 %v405, %v404
    %v429 = vpack.c.b16 %v407, %v406
    %v430 = vpack.c.b16 %v409, %v408
    %v431 = vpack.c.b16 %v411, %v410
    %v432 = vpack.c.b16 %v413, %v412
    %v433 = vpack.c.b16 %v415, %v414
    %v434 = vpack.c.b16 %v417, %v416
    %v435 = vpack.c.b16 %v419, %v418
    %452 = vmatprep.subr.bf16.mxu0 0
    %453 = vmatpush1.bf16.msra.mxu0 %v420
    %454 = vmatprep.subr.bf16.mxu0 0
    %455 = vmatpush1.bf16.msra.mxu0 %v421
    %456 = vmatprep.subr.bf16.mxu0 0
    %457 = vmatpush1.bf16.msra.mxu0 %v422
    %458 = vmatprep.subr.bf16.mxu0 0
    %459 = vmatpush1.bf16.msra.mxu0 %v423
    %460 = vmatprep.subr.bf16.mxu0 0
    %461 = vmatpush1.bf16.msra.mxu0 %v424
    %462 = vmatprep.subr.bf16.mxu0 0
    %463 = vmatpush1.bf16.msra.mxu0 %v425
    %464 = vmatprep.subr.bf16.mxu0 0
    %465 = vmatpush1.bf16.msra.mxu0 %v426
    %466 = vmatprep.subr.bf16.mxu0 0
    %467 = vmatpush1.bf16.msra.mxu0 %v427
    %468 = vmatprep.subr.bf16.mxu0 0
    %469 = vmatpush1.bf16.msra.mxu0 %v428
    %470 = vmatprep.subr.bf16.mxu0 0
    %471 = vmatpush1.bf16.msra.mxu0 %v429
    %472 = vmatprep.subr.bf16.mxu0 0
    %473 = vmatpush1.bf16.msra.mxu0 %v430
    %474 = vmatprep.subr.bf16.mxu0 0
    %475 = vmatpush1.bf16.msra.mxu0 %v431
    %476 = vmatprep.subr.bf16.mxu0 0
    %477 = vmatpush1.bf16.msra.mxu0 %v432
    %478 = vmatprep.subr.bf16.mxu0 0
    %479 = vmatpush1.bf16.msra.mxu0 %v433
    %480 = vmatprep.subr.bf16.mxu0 0
    %481 = vmatpush1.bf16.msra.mxu0 %v434
    %482 = vmatprep.subr.bf16.mxu0 0
    %483 = vmatpush1.bf16.msra.mxu0 %v435
    %484 = vmatprep.mubr.bf16.mxu0 %v316
    %485 = vmatmul.mubr.bf16.gmra.mrb[0].mxu0 %v315
    %v486 = vpop.f32.mrb[0].mxu0
    %v487 = vadd.f32 %v354, %v486
    %v488 = vpop.f32.mrb[0].mxu0
    %v489 = vpop.f32.mrb[0].mxu0
    %v490 = vadd.f32 %v354, %v489
    %v491 = vpop.f32.mrb[0].mxu0
    %492 = vdwg.mxu0
    %v493 = vmax.f32 %v487, 0.0
    %v494 = vmax.f32 %v490, 0.0
    %v495 = vld [vmem:[%s7] sm:$0x1]
    %v497 = vlaneseq
    %v498 = vshrl.u32 %v497, 7
    %v499 = vsub.s32 0, %v498
    %v500 = vrot.slane %v495, %v499
    %v502 = vmul.f32 %v493, %v500
    %v503 = vmul.f32 %v494, %v500
    %504 = vadd.xlane.f32.xlu0 %v502
    %v505 = vpop.xlane.xlu0 %504
    %506 = vadd.xlane.f32.xlu0 %v503
    %v507 = vpop.xlane.xlu0 %506
    %v508 = vld [vmem:[#allocation2] sm:$0x1]
    %v510 = vlaneseq
    %v511 = vshrl.u32 %v510, 7
    %v512 = vsub.s32 0, %v511
    %v513 = vrot.slane %v508, %v512
    %v515 = vadd.f32 %v505, %v513
    %v516 = vadd.f32 %v507, %v513
    %vm517 = vcmask 7168
    %518 = vst.msk [vmem:[%s9] sm:$0xff] %vm517, %v515
    %519 = vst.msk [vmem:[%s9 + $0x8] sm:$0xff] %vm517, %v516
    // Predicated region
    $region54: #{tpu_custom_call.1} parent=1 // pred_check
      _
    $region55: #{tpu_custom_call.1} parent=1 // pred_check_branch
      %521 = sbr.rel (0) target = $region57
    $region56: #{tpu_custom_call.1} parent=1 // pred_region
      _
    $region57: #{tpu_custom_call.1} parent=1 // pred_fallthru
      _
    // Predicated region
    $region58: #{tpu_custom_call.1} parent=1 // pred_check
      _
    $region59: #{tpu_custom_call.1} parent=1 // pred_check_branch
      %523 = sbr.rel (0) target = $region61
    $region60: #{tpu_custom_call.1} parent=1 // pred_region
      _
    $region61: #{tpu_custom_call.1} parent=1 // pred_fallthru
      _
    %524 = vsyncpa [#allocation4], 1
    %525 = vsyncpa [#allocation6], 1
    %526 = vsyncpa [#allocation9], 1

</llo_original>
